<compile_context>
chip_gen: v5e
topology: v5e:2x2
jax: 0.10.0
libtpu: 0.0.40
codegen_flags: <defaults>
</compile_context>

<pallas_src>
import functools

import jax
import jax.numpy as jnp
from jax.experimental import pallas as pl
from jax.experimental.pallas import tpu as pltpu


def _grad3d_kernel(x_ref, mask_y_ref, mask_z_ref, out_ref, acc_ref, carry_ref, *,
                   penalty, inv_ndx, inv_ndy, inv_ndz, shift_h, shift_w):
    # x_ref:      (1, tD, HW) input block (original dtype on the wire).
    # mask_*_ref: (1, HW)     precomputed 0/1 f32 validity masks (resident).
    # out_ref:    (1, 1, HW)  f32 per-(N*C) partial, resident across depth tiles.
    # acc_ref:    (1, HW)     f32 running normalized per-lane sum.
    # carry_ref:  (1, HW)     f32 last depth slice of the previous depth tile.
    j = pl.program_id(1)

    # TODO(synk): on v6e/v7x, bf16 inputs could keep the diff/penalty math in
    # packed bf16 (f32 only for the sublane reduce); kept in f32 for robustness.
    x = x_ref[0].astype(jnp.float32)                       # (tD, HW)
    t_d = x.shape[0]
    first = x[0:1, :]
    last = x[t_d - 1:t_d, :]

    if penalty == "l2":
        pen = lambda d: d * d
    else:
        pen = jnp.abs

    @pl.when(j == 0)
    def _():
        acc_ref[...] = jnp.zeros_like(acc_ref)
        carry_ref[...] = first        # makes the cross-tile dx term zero at j == 0

    prev = carry_ref[...]             # depth slice (j*tD - 1), or x[0] when j == 0
    carry_ref[...] = last             # saved for the next depth tile

    # --- depth (D) direction: unmasked roll + reduce, then wrap/carry fix-up ---
    # roll(x, tD-1)[d] == x[(d+1) % tD]  -> next depth neighbour (wraps at end).
    x_dn = pltpu.roll(x, shift=(t_d - 1) % t_d, axis=0)
    col_d = jnp.sum(pen(x_dn - x), axis=0, keepdims=True)
    col_d = col_d - pen(first - last) + pen(first - prev)  # (1, HW) fix-up rows

    # --- H direction: next row of the (H, W) plane is +W lanes away ------------
    x_hn = pltpu.roll(x, shift=shift_h, axis=1)
    col_h = jnp.sum(pen((x_hn - x) * mask_y_ref[...]), axis=0, keepdims=True)

    # --- W direction: next column is +1 lane away ------------------------------
    x_wn = pltpu.roll(x, shift=shift_w, axis=1)
    col_w = jnp.sum(pen((x_wn - x) * mask_z_ref[...]), axis=0, keepdims=True)

    # Single accumulator update per step (scales fold the per-direction means).
    acc_ref[...] += col_d * inv_ndx + col_h * inv_ndy + col_w * inv_ndz

    @pl.when(j == pl.num_programs(1) - 1)
    def _():
        out_ref[...] = acc_ref[...].reshape(out_ref.shape)


def _sublane_multiple(itemsize: int) -> int:
    return {1: 32, 2: 16}.get(itemsize, 8)


def _vmem_capacity_bytes(default: int = 64 * 1024 * 1024) -> int:
    try:
        return int(pltpu.get_tpu_info().vmem_capacity_bytes)
    except Exception:
        return default


def _plan_depth_tiling(D: int, HW: int, itemsize: int, target_bytes: int):
    """Returns (tile_rows, padded_depth, needs_pad_correction)."""
    sub = _sublane_multiple(itemsize)
    slice_bytes = max(1, HW * itemsize)
    if D * slice_bytes <= target_bytes:
        return D, D, False                      # whole depth in one block
    max_rows = max(sub, (target_bytes // slice_bytes) // sub * sub)
    if D % sub == 0:
        t = min(max_rows, D)
        while D % t != 0:                       # largest aligned divisor <= max_rows
            t -= sub
        return t, D, False
    # No sublane-aligned divisor exists: zero-pad the depth up to a tile multiple;
    # the wrapper subtracts the single spurious boundary term analytically.
    t = max_rows
    d_pad = -(-D // t) * t
    return t, d_pad, True


def grad3d(x_pred: jax.Array, penalty: str = "l1",
           depth_tile: int | None = None,
           target_block_bytes: int | None = None) -> jax.Array:
    """Pallas TPU implementation of Grad3d.forward. x_pred: (N, C, D, H, W)."""
    if penalty not in ("l1", "l2"):
        raise ValueError(f"Unknown penalty type: {penalty}")
    N, C, D, H, W = x_pred.shape
    bc, HW = N * C, H * W
    itemsize = jnp.dtype(x_pred.dtype).itemsize
    sub = _sublane_multiple(itemsize)

    vmem_cap = _vmem_capacity_bytes()
    if target_block_bytes is None:
        # ~4 MiB raw blocks on 128 MiB-VMEM parts (v5e/v6e), ~2 MiB on v7x (64 MiB).
        target_block_bytes = (4 << 20) if vmem_cap >= (96 << 20) else (2 << 20)

    x_flat = x_pred.reshape(bc, D, HW)          # lane-dense layout: H*W on lanes

    if depth_tile is not None:
        t_d = int(depth_tile)
        if t_d != D and (D % t_d != 0 or t_d % sub != 0):
            raise ValueError(
                f"depth_tile={t_d} must divide D={D} and be a multiple of {sub} "
                f"for dtype {x_pred.dtype} (or equal D)")
        d_pad, needs_corr = D, False
    else:
        t_d, d_pad, needs_corr = _plan_depth_tiling(D, HW, itemsize, target_block_bytes)

    corr_slice = x_flat[:, D - 1, :] if needs_corr else None
    if d_pad != D:
        x_flat = jnp.pad(x_flat, ((0, 0), (0, d_pad - D), (0, 0)))
    d_tiles = d_pad // t_d

    # Per-direction 1/mean-count scales (folded into the kernel accumulator).
    # NOTE: like the PyTorch reference, the result is NaN when D, H or W == 1.
    def _inv(n):
        return (1.0 / n) if n > 0 else float("nan")
    inv_ndx = _inv(bc * (D - 1) * HW)
    inv_ndy = _inv(bc * D * (H - 1) * W)
    inv_ndz = _inv(bc * D * H * (W - 1))

    lane = jnp.arange(HW, dtype=jnp.int32)
    mask_y = (lane < (H - 1) * W).astype(jnp.float32).reshape(1, HW)      # h < H-1
    mask_z = ((lane % W) != (W - 1)).astype(jnp.float32).reshape(1, HW)   # w < W-1

    kernel = functools.partial(
        _grad3d_kernel, penalty=penalty,
        inv_ndx=inv_ndx, inv_ndy=inv_ndy, inv_ndz=inv_ndz,
        shift_h=(HW - W) % HW, shift_w=(HW - 1) % HW)

    # VMEM budget derived from the actual footprint (double-buffered input block,
    # ~3 live f32 block temporaries, sublane-padded resident rows), 2x headroom.
    block_in = t_d * HW * itemsize
    block_f32 = t_d * HW * 4
    resident_rows = 8 * HW * 4 * 8     # masks/acc/carry/out, (8,.)-padded, dbl-buf
    est = 2 * block_in + 3 * block_f32 + resident_rows
    vmem_limit = int(min(max(2 * est, 24 * 1024 * 1024), int(0.75 * vmem_cap)))

    partials = pl.pallas_call(
        kernel,
        out_shape=jax.ShapeDtypeStruct((bc, 1, HW), jnp.float32),
        grid_spec=pltpu.PrefetchScalarGridSpec(
            num_scalar_prefetch=0,
            grid=(bc, d_tiles),
            in_specs=[
                pl.BlockSpec((1, t_d, HW), lambda i, j: (i, j, 0)),
                pl.BlockSpec((1, HW), lambda i, j: (0, 0)),   # mask_y (resident)
                pl.BlockSpec((1, HW), lambda i, j: (0, 0)),   # mask_z (resident)
            ],
            out_specs=pl.BlockSpec((1, 1, HW), lambda i, j: (i, 0, 0)),
            scratch_shapes=[
                pltpu.VMEM((1, HW), jnp.float32),   # acc
                pltpu.VMEM((1, HW), jnp.float32),   # carry
            ],
        ),
        compiler_params=pltpu.CompilerParams(
            # TODO(synk): when bc == 1 on v7x the sequential depth carry leaves one
            # TensorCore idle; an overlap-refetch depth split would allow core-parallel depth.
            dimension_semantics=("parallel", "arbitrary"),
            vmem_limit_bytes=vmem_limit,
        ),
    )(x_flat, mask_y, mask_z)

    total = jnp.sum(partials, dtype=jnp.float32)
    if needs_corr:
        last_f32 = corr_slice.astype(jnp.float32)
        spur = jnp.sum(last_f32 * last_f32 if penalty == "l2" else jnp.abs(last_f32))
        total = total - spur * inv_ndx          # remove the real->pad boundary dx term

    return (total / 3.0).astype(jnp.float32)


def _grad3d_ref(x_pred: jax.Array, penalty: str = "l1") -> jax.Array:
    x = x_pred.astype(jnp.float32)
    dx = jnp.abs(x[:, :, 1:, :, :] - x[:, :, :-1, :, :])
    dy = jnp.abs(x[:, :, :, 1:, :] - x[:, :, :, :-1, :])
    dz = jnp.abs(x[:, :, :, :, 1:] - x[:, :, :, :, :-1])
    if penalty == "l2":
        dx, dy, dz = dx ** 2, dy ** 2, dz ** 2
    return (jnp.mean(dx) + jnp.mean(dy) + jnp.mean(dz)) / 3.0


if __name__ == "__main__":
    key = jax.random.PRNGKey(0)
    k1, k2, k3, k4 = jax.random.split(key, 4)
    cases = [
        # (name, input, forced depth_tile, forced target_block_bytes)
        ("single-tile f32",
         jax.random.normal(k1, (2, 4, 8, 16, 16), jnp.float32), None, None),
        # multi depth-tile: exercises the cross-tile carry + wrap fix-up
        ("multi-tile f32",
         jax.random.normal(k2, (2, 2, 16, 8, 16), jnp.float32), 8, None),
        # bf16 input with packed-sublane-aligned (16-row) depth tiles
        ("multi-tile bf16",
         jax.random.normal(k3, (1, 2, 32, 8, 16), jnp.float32).astype(jnp.bfloat16),
         16, None),
        # depth with no aligned divisor at a tiny block target: zero-pad + correction
        ("ragged-depth f32",
         jax.random.normal(k4, (1, 1, 10, 8, 16), jnp.float32), None, 2048),
    ]

    failures = []
    for name, x, dt, tb in cases:
        for penalty in ("l1", "l2"):
            out = jax.block_until_ready(
                grad3d(x, penalty=penalty, depth_tile=dt, target_block_bytes=tb))
            ref = jax.block_until_ready(_grad3d_ref(x, penalty=penalty))
            if not bool(jnp.allclose(out, ref, rtol=2e-4, atol=1e-6)):
                failures.append((name, penalty, float(out), float(ref)))

    if failures:
        raise SystemExit(f"mismatch vs reference: {failures}")
    print("KERNEL_OK")
</pallas_src>

<mosaic_0001>
module attributes {stable_mosaic.version = 11 : i64} {
  func.func @_grad3d_kernel(%arg0: i32, %arg1: i32, %arg2: memref<1x8x256xf32, #tpu.memory_space<vmem>>, %arg3: memref<1x256xf32, #tpu.memory_space<vmem>>, %arg4: memref<1x256xf32, #tpu.memory_space<vmem>>, %arg5: memref<1x1x256xf32, #tpu.memory_space<vmem>>, %arg6: memref<1x256xf32, #tpu.memory_space<vmem>>, %arg7: memref<1x256xf32, #tpu.memory_space<vmem>>) attributes {dimension_semantics = [#tpu.dimension_semantics<parallel>, #tpu.dimension_semantics<arbitrary>], iteration_bounds = array<i64: 8, 1>, scalar_prefetch = 0 : i64, scratch_operands = 2 : i64, tpu.core_type = #tpu.core_type<tc>, window_params = [{transform_indices = @transform_0, window_bounds = array<i64: 1, 8, 256>}, {pipeline_mode = #tpu.pipeline_mode<synchronous>, transform_indices = @transform_1, window_bounds = array<i64: 1, 256>}, {pipeline_mode = #tpu.pipeline_mode<synchronous>, transform_indices = @transform_2, window_bounds = array<i64: 1, 256>}, {transform_indices = @transform_3, window_bounds = array<i64: 1, 1, 256>}]} {
    %c0 = arith.constant 0 : index
    %c0_0 = arith.constant 0 : index
    %c0_1 = arith.constant 0 : index
    %0 = vector.load %arg2[%c0, %c0_0, %c0_1] : memref<1x8x256xf32, #tpu.memory_space<vmem>>, vector<1x8x256xf32>
    %1 = vector.shape_cast %0 : vector<1x8x256xf32> to vector<8x256xf32>
    %2 = vector.extract_strided_slice %1 {offsets = [0, 0], sizes = [1, 256], strides = [1, 1]} : vector<8x256xf32> to vector<1x256xf32>
    %3 = vector.extract_strided_slice %1 {offsets = [7, 0], sizes = [1, 256], strides = [1, 1]} : vector<8x256xf32> to vector<1x256xf32>
    %c0_i32 = arith.constant 0 : i32
    %4 = arith.cmpi eq, %arg1, %c0_i32 : i32
    %5 = arith.extui %4 : i1 to i32
    %c0_i32_2 = arith.constant 0 : i32
    %6 = arith.cmpi ne, %5, %c0_i32_2 : i32
    scf.if %6 {
      %cst_22 = arith.constant 0.000000e+00 : f32
      %50 = vector.broadcast %cst_22 : f32 to vector<1x256xf32>
      %c0_23 = arith.constant 0 : index
      %c0_24 = arith.constant 0 : index
      %51 = vector.load %arg6[%c0_23, %c0_24] : memref<1x256xf32, #tpu.memory_space<vmem>>, vector<1x256xf32>
      tpu.vector_store %arg6[%c0_23, %c0_24], %50 {strides = array<i32>} : memref<1x256xf32, #tpu.memory_space<vmem>>, vector<1x256xf32>,
      %c0_25 = arith.constant 0 : index
      %c0_26 = arith.constant 0 : index
      %52 = vector.load %arg7[%c0_25, %c0_26] : memref<1x256xf32, #tpu.memory_space<vmem>>, vector<1x256xf32>
      tpu.vector_store %arg7[%c0_25, %c0_26], %2 {strides = array<i32>} : memref<1x256xf32, #tpu.memory_space<vmem>>, vector<1x256xf32>,
    } else {
    }
    %c0_3 = arith.constant 0 : index
    %c0_4 = arith.constant 0 : index
    %7 = vector.load %arg7[%c0_3, %c0_4] : memref<1x256xf32, #tpu.memory_space<vmem>>, vector<1x256xf32>
    %c0_5 = arith.constant 0 : index
    %c0_6 = arith.constant 0 : index
    %8 = vector.load %arg7[%c0_5, %c0_6] : memref<1x256xf32, #tpu.memory_space<vmem>>, vector<1x256xf32>
    tpu.vector_store %arg7[%c0_5, %c0_6], %3 {strides = array<i32>} : memref<1x256xf32, #tpu.memory_space<vmem>>, vector<1x256xf32>,
    %c7_i32 = arith.constant 7 : i32
    %9 = tpu.dynamic_rotate %1 by %c7_i32 dim 0 : vector<8x256xf32>, i32 -> vector<8x256xf32>
    %10 = arith.subf %9, %1 : vector<8x256xf32>
    %11 = math.absf %10 : vector<8x256xf32>
    %cst = arith.constant dense<0.000000e+00> : vector<256xf32>
    %12 = vector.multi_reduction <add>, %11, %cst [0] : vector<8x256xf32> to vector<256xf32>
    %13 = vector.shape_cast %12 : vector<256xf32> to vector<1x256xf32>
    %14 = arith.subf %2, %3 : vector<1x256xf32>
    %15 = math.absf %14 : vector<1x256xf32>
    %16 = arith.subf %13, %15 : vector<1x256xf32>
    %17 = arith.subf %2, %7 : vector<1x256xf32>
    %18 = math.absf %17 : vector<1x256xf32>
    %19 = arith.addf %16, %18 : vector<1x256xf32>
    %c240_i32 = arith.constant 240 : i32
    %20 = tpu.dynamic_rotate %1 by %c240_i32 dim 1 : vector<8x256xf32>, i32 -> vector<8x256xf32>
    %21 = arith.subf %20, %1 : vector<8x256xf32>
    %c0_7 = arith.constant 0 : index
    %c0_8 = arith.constant 0 : index
    %22 = vector.load %arg3[%c0_7, %c0_8] : memref<1x256xf32, #tpu.memory_space<vmem>>, vector<1x256xf32>
    %23 = vector.broadcast %22 : vector<1x256xf32> to vector<8x256xf32>
    %24 = arith.mulf %21, %23 : vector<8x256xf32>
    %25 = math.absf %24 : vector<8x256xf32>
    %cst_9 = arith.constant dense<0.000000e+00> : vector<256xf32>
    %26 = vector.multi_reduction <add>, %25, %cst_9 [0] : vector<8x256xf32> to vector<256xf32>
    %27 = vector.shape_cast %26 : vector<256xf32> to vector<1x256xf32>
    %c255_i32 = arith.constant 255 : i32
    %28 = tpu.dynamic_rotate %1 by %c255_i32 dim 1 : vector<8x256xf32>, i32 -> vector<8x256xf32>
    %29 = arith.subf %28, %1 : vector<8x256xf32>
    %c0_10 = arith.constant 0 : index
    %c0_11 = arith.constant 0 : index
    %30 = vector.load %arg4[%c0_10, %c0_11] : memref<1x256xf32, #tpu.memory_space<vmem>>, vector<1x256xf32>
    %31 = vector.broadcast %30 : vector<1x256xf32> to vector<8x256xf32>
    %32 = arith.mulf %29, %31 : vector<8x256xf32>
    %33 = math.absf %32 : vector<8x256xf32>
    %cst_12 = arith.constant dense<0.000000e+00> : vector<256xf32>
    %34 = vector.multi_reduction <add>, %33, %cst_12 [0] : vector<8x256xf32> to vector<256xf32>
    %35 = vector.shape_cast %34 : vector<256xf32> to vector<1x256xf32>
    %c0_13 = arith.constant 0 : index
    %c0_14 = arith.constant 0 : index
    %36 = vector.load %arg6[%c0_13, %c0_14] : memref<1x256xf32, #tpu.memory_space<vmem>>, vector<1x256xf32>
    %cst_15 = arith.constant 6.97544674E-5 : f32
    %37 = vector.broadcast %cst_15 : f32 to vector<1x256xf32>
    %38 = arith.mulf %19, %37 : vector<1x256xf32>
    %cst_16 = arith.constant 6.510417E-5 : f32
    %39 = vector.broadcast %cst_16 : f32 to vector<1x256xf32>
    %40 = arith.mulf %27, %39 : vector<1x256xf32>
    %41 = arith.addf %38, %40 : vector<1x256xf32>
    %cst_17 = arith.constant 6.510417E-5 : f32
    %42 = vector.broadcast %cst_17 : f32 to vector<1x256xf32>
    %43 = arith.mulf %35, %42 : vector<1x256xf32>
    %44 = arith.addf %41, %43 : vector<1x256xf32>
    %45 = arith.addf %36, %44 : vector<1x256xf32>
    %c0_18 = arith.constant 0 : index
    %c0_19 = arith.constant 0 : index
    %46 = vector.load %arg6[%c0_18, %c0_19] : memref<1x256xf32, #tpu.memory_space<vmem>>, vector<1x256xf32>
    tpu.vector_store %arg6[%c0_18, %c0_19], %45 {strides = array<i32>} : memref<1x256xf32, #tpu.memory_space<vmem>>, vector<1x256xf32>,
    %c0_i32_20 = arith.constant 0 : i32
    %47 = arith.cmpi eq, %arg1, %c0_i32_20 : i32
    %48 = arith.extui %47 : i1 to i32
    %c0_i32_21 = arith.constant 0 : i32
    %49 = arith.cmpi ne, %48, %c0_i32_21 : i32
    scf.if %49 {
      %c0_22 = arith.constant 0 : index
      %c0_23 = arith.constant 0 : index
      %50 = vector.load %arg6[%c0_22, %c0_23] : memref<1x256xf32, #tpu.memory_space<vmem>>, vector<1x256xf32>
      %51 = vector.shape_cast %50 : vector<1x256xf32> to vector<1x1x256xf32>
      %c0_24 = arith.constant 0 : index
      %c0_25 = arith.constant 0 : index
      %c0_26 = arith.constant 0 : index
      %52 = vector.load %arg5[%c0_24, %c0_25, %c0_26] : memref<1x1x256xf32, #tpu.memory_space<vmem>>, vector<1x1x256xf32>
      tpu.vector_store %arg5[%c0_24, %c0_25, %c0_26], %51 {strides = array<i32>} : memref<1x1x256xf32, #tpu.memory_space<vmem>>, vector<1x1x256xf32>,
    } else {
    }
    return
  }
  func.func @transform_0(%arg0: i32, %arg1: i32) -> (i32, i32, i32) {
    %c0_i32 = arith.constant 0 : i32
    %c0_i32_0 = arith.constant 0 : i32
    return %arg0, %arg1, %c0_i32 : i32, i32, i32
  }
  func.func @transform_1(%arg0: i32, %arg1: i32) -> (i32, i32) {
    %c0_i32 = arith.constant 0 : i32
    %c0_i32_0 = arith.constant 0 : i32
    %c0_i32_1 = arith.constant 0 : i32
    return %c0_i32, %c0_i32_0 : i32, i32
  }
  func.func @transform_2(%arg0: i32, %arg1: i32) -> (i32, i32) {
    %c0_i32 = arith.constant 0 : i32
    %c0_i32_0 = arith.constant 0 : i32
    %c0_i32_1 = arith.constant 0 : i32
    return %c0_i32, %c0_i32_0 : i32, i32
  }
  func.func @transform_3(%arg0: i32, %arg1: i32) -> (i32, i32, i32) {
    %c0_i32 = arith.constant 0 : i32
    %c0_i32_0 = arith.constant 0 : i32
    %c0_i32_1 = arith.constant 0 : i32
    return %arg0, %c0_i32, %c0_i32_0 : i32, i32, i32
  }
}

</mosaic_0001>

<llo_original>
// kernel: tpu_custom_call.1
$region0: #{tpu_custom_call.1}
  #allocation0 [shape = 'u32[]', space=smem, size = 0x4, offset = 0x4, fixed_abs, tag = 'smem constant byte address 0x4 - core index']
  #allocation1 [shape = 'u32[72,128]{1,0:T(1,128)}', space=vmem, size = 0x9000, scoped, tag = 'internal scratch']
  #allocation2 [shape = 'f32[1,256]{1,0:T(1,128)}', space=vmem, size = 0x400, scoped, tag = 'scratch operand']
  #allocation3 [shape = 'f32[1,256]{1,0:T(1,128)}', space=vmem, size = 0x400, scoped, tag = 'scratch operand']
  %s0 = inlined_call_operand.hbm [shape: f32[8,8,256], index: 0, kind: input, shape index: {}]
  %s1 = inlined_call_operand.hbm [shape: f32[1,256], index: 1, kind: input, shape index: {}]
  %s2 = inlined_call_operand.hbm [shape: f32[1,256], index: 2, kind: input, shape index: {}]
  %s3 = inlined_call_operand.hbm [shape: f32[8,1,256], index: 3, kind: output, shape index: {}]
  %s4 = sld [smem:[#allocation0]]
  $region65: #{tpu_custom_call.1} parent=0
    _
  %s6 = ssub.s32 1, %s4
  %s7 = scalar_select 0, %s6, %s4
  $region1: #{tpu_custom_call.1} parent=0
    #allocation4 [shape = 'u8[16384]{0}', space=vmem, size = 0x4000, scoped, tag = 'input window, operand 0']
    #allocation5 [shape = 's32[2]{0}', space=sflag, size = 0x8, scoped, tag = 'scoped memory for tpu_custom_call.1']
    #allocation6 [shape = 's32[2]{0}', space=sflag, size = 0x8, scoped, tag = 'scoped memory for tpu_custom_call.1']
    #allocation7 [shape = 'u8[1024]{0}', space=vmem, size = 0x400, scoped, tag = 'input window, operand 1, single buffered']
    #allocation8 [shape = 's32[1]{0}', space=sflag, size = 0x4, scoped, tag = 'scoped memory for tpu_custom_call.1']
    #allocation9 [shape = 'u8[1024]{0}', space=vmem, size = 0x400, scoped, tag = 'input window, operand 2, single buffered']
    #allocation10 [shape = 'u8[2048]{0}', space=vmem, size = 0x800, scoped, tag = 'output window, operand 0']
    %8 = vsyncpa [#allocation5], 0
    %s9 = scalar_lea.sflag [#allocation5], 1
    %10 = vsyncpa %s9, 0
    %11 = vsyncpa [#allocation8], 0
    %12 = vsyncpa [#allocation6], 0
    %s13 = scalar_lea.sflag [#allocation6], 1
    %14 = vsyncpa %s13, 0
    loop: start=0, step=1, limit=10
    $region2: #{tpu_custom_call.1} parent=1 // loop_pre_header
      _
    $region3: #{tpu_custom_call.1} parent=1 // loop_header
      %s16 = sphi 0, %s20
      %p17 = scmp.ge.s32.totalorder %s16, 10
      %s23 = sphi 0, %s35
      %s24 = sphi 0, %s31
      %s25 = sphi 0, %s23
      %s26 = sphi 0, %s24
      %s27 = sphi 0, %s25
      %s28 = sphi 0, %s26
      %s40 = sphi 0, %s42
      %s43 = sphi 0, %s40
      %s44 = sphi 0, %s43
      %s60 = sphi 0, %s44
      %s64 = sphi 0, %s64
      %s66 = sphi 0, %s64
      %s67 = sphi 0, %s66
      %s81 = sphi 0, %s67
      %s85 = sphi 0, %s85
      %s87 = sphi 0, %s85
      %s88 = sphi 0, %s87
      %s102 = sphi 0, %s88
      %s108 = sphi 0, %s110
      %s111 = sphi 0, %s108
      %s112 = sphi 0, %s111
      %s128 = sphi 0, %s112
    $region4: #{tpu_custom_call.1} parent=1 // loop_header_branch
      %19 = sbr.rel (%p17) target = $region8
    $region5: #{tpu_custom_call.1} parent=1 // loop_body
      %s21 = ssub.s32 %s16, 1
      %s22 = ssub.s32 %s16, 2
      %s29 = sadd.s32 1, %s24
      %p30 = scmp.ge.s32.totalorder %s29, 1
      %s31 = scalar_select %p30, 0, %s29
      %s32 = sadd.s32 1, %s23
      %s33 = scalar_select %p30, %s32, %s23
      %p34 = scmp.ge.s32.totalorder %s33, 8
      %s35 = scalar_select %p34, 0, %s33
      %s36 = ssub.s32 %s23, %s35
      %s37 = ssub.s32 %s24, %s31
      %s38 = sor.u32 %s36, %s37
      %p39 = scmp.eq.s32.totalorder %s38, 0
      %s41 = sadd.s32 %s40, 1
      %s42 = scalar_select %p39, %s40, %s41
      %p45 = pneg %p39
      %p46 = scmp.eq.s32.totalorder %s16, 7
      %p47 = por %p45, %p46
      %p48 = scmp.ne.s32.totalorder %s40, %s43
      %p49 = scmp.eq.s32.totalorder %s16, 0
      %p50 = por %p48, %p49
      %p51 = scmp.ne.s32.totalorder %s40, %s43
      %p52 = scmp.eq.s32.totalorder %s21, 7
      %p53 = por %p51, %p52
      %p54 = scmp.ne.s32.totalorder %s43, %s44
      %p55 = scmp.eq.s32.totalorder %s21, 0
      %p56 = por %p54, %p55
      %p57 = scmp.ne.s32.totalorder %s43, %s44
      %p58 = scmp.eq.s32.totalorder %s22, 7
      %p59 = por %p57, %p58
      %p61 = scmp.ne.s32.totalorder %s44, %s60
      %p62 = scmp.eq.s32.totalorder %s22, 0
      %p63 = por %p61, %p62
      %s65 = sadd.s32 %s64, 1
      %p68 = scmp.eq.s32.totalorder %s16, 7
      %p69 = scmp.ne.s32.totalorder %s64, %s66
      %p70 = scmp.eq.s32.totalorder %s16, 0
      %p71 = por %p69, %p70
      %p72 = scmp.ne.s32.totalorder %s64, %s66
      %p73 = scmp.eq.s32.totalorder %s21, 7
      %p74 = por %p72, %p73
      %p75 = scmp.ne.s32.totalorder %s66, %s67
      %p76 = scmp.eq.s32.totalorder %s21, 0
      %p77 = por %p75, %p76
      %p78 = scmp.ne.s32.totalorder %s66, %s67
      %p79 = scmp.eq.s32.totalorder %s22, 7
      %p80 = por %p78, %p79
      %p82 = scmp.ne.s32.totalorder %s67, %s81
      %p83 = scmp.eq.s32.totalorder %s22, 0
      %p84 = por %p82, %p83
      %s86 = sadd.s32 %s85, 1
      %p89 = scmp.eq.s32.totalorder %s16, 7
      %p90 = scmp.ne.s32.totalorder %s85, %s87
      %p91 = scmp.eq.s32.totalorder %s16, 0
      %p92 = por %p90, %p91
      %p93 = scmp.ne.s32.totalorder %s85, %s87
      %p94 = scmp.eq.s32.totalorder %s21, 7
      %p95 = por %p93, %p94
      %p96 = scmp.ne.s32.totalorder %s87, %s88
      %p97 = scmp.eq.s32.totalorder %s21, 0
      %p98 = por %p96, %p97
      %p99 = scmp.ne.s32.totalorder %s87, %s88
      %p100 = scmp.eq.s32.totalorder %s22, 7
      %p101 = por %p99, %p100
      %p103 = scmp.ne.s32.totalorder %s88, %s102
      %p104 = scmp.eq.s32.totalorder %s22, 0
      %p105 = por %p103, %p104
      %s106 = ssub.s32 %s23, %s35
      %p107 = scmp.eq.s32.totalorder %s106, 0
      %s109 = sadd.s32 %s108, 1
      %s110 = scalar_select %p107, %s108, %s109
      %p113 = pneg %p107
      %p114 = scmp.eq.s32.totalorder %s16, 7
      %p115 = por %p113, %p114
      %p116 = scmp.ne.s32.totalorder %s108, %s111
      %p117 = scmp.eq.s32.totalorder %s16, 0
      %p118 = por %p116, %p117
      %p119 = scmp.ne.s32.totalorder %s108, %s111
      %p120 = scmp.eq.s32.totalorder %s21, 7
      %p121 = por %p119, %p120
      %p122 = scmp.ne.s32.totalorder %s111, %s112
      %p123 = scmp.eq.s32.totalorder %s21, 0
      %p124 = por %p122, %p123
      %p125 = scmp.ne.s32.totalorder %s111, %s112
      %p126 = scmp.eq.s32.totalorder %s22, 7
      %p127 = por %p125, %p126
      %p129 = scmp.ne.s32.totalorder %s112, %s128
      %p130 = scmp.eq.s32.totalorder %s22, 0
      %p131 = por %p129, %p130
      %p132 = scmp.le.s32.totalorder 1, %s16
      %p133 = scmp.lt.s32.totalorder %s16, 9
      %p134 = pnand %p132, %p133
      %p135 = pneg %p134
      // Predicated region
      $region9: #{tpu_custom_call.1} parent=5 // pred_check
        _
      $region10: #{tpu_custom_call.1} parent=5 // pred_check_branch
        %137 = sbr.rel (%p134) target = $region12
      $region11: #{tpu_custom_call.1} parent=5 // pred_region
        %s138 = ssub.s32 %s16, 1
        // Predicated region
        $region13: #{tpu_custom_call.1} parent=11 // pred_check
          %p139 = pneg %p77
        $region14: #{tpu_custom_call.1} parent=11 // pred_check_branch
          %141 = sbr.rel (%p139) target = $region16
        $region15: #{tpu_custom_call.1} parent=11 // pred_region
          %143 = vsyncadd [#allocation8], 0
          %s145 = sshll.u32 %s1, 4
          %s146 = int_to_ptr.hbm [resolvable:$true] %s145
          %s147 = sshll.u32 [#allocation7], 4
          %s148 = int_to_ptr.vmem [resolvable:$true] %s147
          %150 = dma.hbm_to_vmem [thread:$0]  %s146, 32, %s148, [#allocation8]
        $region16: #{tpu_custom_call.1} parent=11 // pred_fallthru
          _
        // Predicated region
        $region17: #{tpu_custom_call.1} parent=11 // pred_check
          %p151 = pneg %p98
        $region18: #{tpu_custom_call.1} parent=11 // pred_check_branch
          %153 = sbr.rel (%p151) target = $region20
        $region19: #{tpu_custom_call.1} parent=11 // pred_region
          %155 = vsyncadd [#allocation8], 0
          %s157 = sshll.u32 %s2, 4
          %s158 = int_to_ptr.hbm [resolvable:$true] %s157
          %s159 = sshll.u32 [#allocation9], 4
          %s160 = int_to_ptr.vmem [resolvable:$true] %s159
          %162 = dma.hbm_to_vmem [thread:$0]  %s158, 32, %s160, [#allocation8]
        $region20: #{tpu_custom_call.1} parent=11 // pred_fallthru
          _
      $region12: #{tpu_custom_call.1} parent=5 // pred_fallthru
        _
      %p163 = scmp.lt.s32.totalorder %s16, 8
      // Predicated region
      $region21: #{tpu_custom_call.1} parent=5 // pred_check
        %p164 = pneg %p163
      $region22: #{tpu_custom_call.1} parent=5 // pred_check_branch
        %166 = sbr.rel (%p164) target = $region24
      $region23: #{tpu_custom_call.1} parent=5 // pred_region
        // Predicated region
        $region25: #{tpu_custom_call.1} parent=23 // pred_check
          %p167 = pneg %p50
        $region26: #{tpu_custom_call.1} parent=23 // pred_check_branch
          %169 = sbr.rel (%p167) target = $region28
        $region27: #{tpu_custom_call.1} parent=23 // pred_region
          %s170 = sand.u32 %s40, 1
          %s171 = scalar_lea.sflag [#allocation5], %s170
          %s172 = sand.u32 %s40, 1
          %s173 = smul.addr %s172, 16
          %s174 = scalar_lea.vmem [#allocation4], %s173
          %176 = vsyncadd %s171, 0
          %s177 = smul.addr %s24, 2
          %s178 = smul.addr %s23, 2
          %s179 = sadd.s32 %s177, %s178
          %s180 = smul.addr %s179, 8
          %s181 = scalar_lea.hbm %s0, %s180
          %s183 = sshll.u32 %s181, 4
          %s184 = int_to_ptr.hbm [resolvable:$true] %s183
          %s185 = sshll.u32 %s174, 4
          %s186 = int_to_ptr.vmem [resolvable:$true] %s185
          %188 = dma.hbm_to_vmem [thread:$0]  %s184, 256, %s186, %s171
        $region28: #{tpu_custom_call.1} parent=23 // pred_fallthru
          _
      $region24: #{tpu_custom_call.1} parent=5 // pred_fallthru
        _
      %p189 = scmp.le.s32.totalorder 1, %s16
      %p190 = scmp.lt.s32.totalorder %s16, 9
      %p191 = pnand %p189, %p190
      %p192 = pneg %p191
      // Predicated region
      $region29: #{tpu_custom_call.1} parent=5 // pred_check
        _
      $region30: #{tpu_custom_call.1} parent=5 // pred_check_branch
        %194 = sbr.rel (%p191) target = $region32
      $region31: #{tpu_custom_call.1} parent=5 // pred_region
        %s195 = ssub.s32 %s16, 1
        %s196 = sand.u32 %s43, 1
        %s197 = scalar_lea.sflag [#allocation5], %s196
        %s198 = sand.u32 %s43, 1
        %s199 = smul.addr %s198, 16
        %s200 = scalar_lea.vmem [#allocation4], %s199
        // Predicated region
        $region33: #{tpu_custom_call.1} parent=31 // pred_check
          %p201 = pneg %p56
        $region34: #{tpu_custom_call.1} parent=31 // pred_check_branch
          %203 = sbr.rel (%p201) target = $region36
        $region35: #{tpu_custom_call.1} parent=31 // pred_region
          %205 = dma.done %s197, 256
        $region36: #{tpu_custom_call.1} parent=31 // pred_fallthru
          _
        // Predicated region
        $region37: #{tpu_custom_call.1} parent=31 // pred_check
          %p206 = pneg %p77
        $region38: #{tpu_custom_call.1} parent=31 // pred_check_branch
          %208 = sbr.rel (%p206) target = $region40
        $region39: #{tpu_custom_call.1} parent=31 // pred_region
          %210 = dma.done [#allocation8], 32
        $region40: #{tpu_custom_call.1} parent=31 // pred_fallthru
          _
        // Predicated region
        $region41: #{tpu_custom_call.1} parent=31 // pred_check
          %p211 = pneg %p98
        $region42: #{tpu_custom_call.1} parent=31 // pred_check_branch
          %213 = sbr.rel (%p211) target = $region44
        $region43: #{tpu_custom_call.1} parent=31 // pred_region
          %215 = dma.done [#allocation8], 32
        $region44: #{tpu_custom_call.1} parent=31 // pred_fallthru
          _
        %s216 = sand.u32 %s43, 1
        %s217 = scalar_lea.sflag [#allocation5], %s216
        %s218 = sand.u32 %s43, 1
        %s219 = smul.addr %s218, 16
        %s220 = scalar_lea.vmem [#allocation4], %s219
        %p221 = pneg %p56
        %p222 = pneg %p53
        %p223 = pneg %p77
        %p224 = pneg %p74
        %p225 = pneg %p98
        %p226 = pneg %p95
        %p227 = pneg %p124
        %p228 = pneg %p121
        %s229 = sand.u32 %s111, 1
        %s230 = scalar_lea.sflag [#allocation6], %s229
        %s231 = sand.u32 %s111, 1
        %s232 = smul.addr %s231, 2
        %s233 = scalar_lea.vmem [#allocation10], %s232
        %v234 = vld [vmem:[%s200] sm:$0xff]
        %v235 = vld [vmem:[%s200 + $0x8] sm:$0xff]
        %p236 = scmp.eq.s32.totalorder %s26, 0
        // Predicated region
        $region45: #{tpu_custom_call.1} parent=31 // pred_check
          %p237 = pneg %p236
        $region46: #{tpu_custom_call.1} parent=31 // pred_check_branch
          %239 = sbr.rel (%p237) target = $region48
        $region47: #{tpu_custom_call.1} parent=31 // pred_region
          %v240 = vlaneseq
          %vm241 = vcmp.ge.s32.totalorder %v240, 0
          %vm242 = vcmp.lt.s32.totalorder %v240, 256
          %vm243 = vmand %vm241, %vm242
          %244 = vst.msk [vmem:[#allocation2] sm:$0x3] %vm243, 0.0
          %v247 = vrot.slane %v235, 7
          %vm248 = vcmask 1040384
          %v249 = vsel %vm248, %v234, %v247
          %251 = vst.msk [vmem:[#allocation3] sm:$0x3] %vm243, %v249
        $region48: #{tpu_custom_call.1} parent=31 // pred_fallthru
          _
        %v252 = vld [vmem:[#allocation3] sm:$0x3]
        %255 = vst [vmem:[#allocation1] sm:$0xff] %v234
        %256 = vst [vmem:[#allocation1 + $0x9] sm:$0xff] %v235
        %s257 = scalar_lea.vmem [#allocation1], 7
        %v258 = vld [vmem:[%s257] ss:$9 sm:$0xff]
        %v260 = vlaneseq
        %vm261 = vcmp.ge.s32.totalorder %v260, 0
        %vm262 = vcmp.lt.s32.totalorder %v260, 256
        %vm263 = vmand %vm261, %vm262
        %264 = vst.msk [vmem:[#allocation3] sm:$0x3] %vm263, %v258
        %v265 = vrot.slane %v234, 1
        %v266 = vrot.slane %v235, 1
        %v267 = vsub.f32 %v265, %v234
        %v268 = vsub.f32 %v266, %v235
        %v269 = vand.u32 2147483647, %v267
        %v270 = vand.u32 2147483647, %v268
        %v271 = vrot.slane %v269, 4
        %v272 = vadd.f32 %v269, %v271
        %v273 = vrot.slane %v272, 2
        %v274 = vadd.f32 %v272, %v273
        %v275 = vrot.slane %v274, 1
        %v276 = vadd.f32 %v274, %v275
        %v277 = vrot.slane %v270, 4
        %v278 = vadd.f32 %v270, %v277
        %v279 = vrot.slane %v278, 2
        %v280 = vadd.f32 %v278, %v279
        %v281 = vrot.slane %v280, 1
        %v282 = vadd.f32 %v280, %v281
        %v283 = vrot.slane %v234, 7
        %v284 = vrot.slane %v235, 7
        %v287 = vsub.f32 %v234, %v283
        %v288 = vsub.f32 %v235, %v284
        %v289 = vand.u32 2147483647, %v287
        %v290 = vand.u32 2147483647, %v288
        %v291 = vsub.f32 %v276, %v289
        %v292 = vsub.f32 %v282, %v290
        %v294 = vperm.slane %v252, 0
        %v295 = vperm.slane %v252, 1
        %v298 = vsub.f32 %v234, %v294
        %v299 = vsub.f32 %v235, %v295
        %v300 = vand.u32 2147483647, %v298
        %v301 = vand.u32 2147483647, %v299
        %v302 = vadd.f32 %v291, %v300
        %v303 = vadd.f32 %v292, %v301
        %304 = vrot.lane.b32.xlu0 %v234, 112
        %v305 = vpop.permute.xlu0 %304
        %306 = vrot.lane.b32.xlu0 %v235, 112
        %v307 = vpop.permute.xlu0 %306
        %v308 = vlaneseq
        %v309 = vand.u32 %v308, 127
        %vm310 = vcmp.lt.s32.totalorder %v309, 112
        %v311 = vsel %vm310, %v305, %v307
        %v312 = vsel %vm310, %v307, %v305
        %v313 = vsub.f32 %v311, %v234
        %v314 = vsub.f32 %v312, %v235
        %v315 = vld [vmem:[#allocation7] sm:$0x3]
        %v317 = vperm.slane %v315, 0
        %v318 = vperm.slane %v315, 1
        %v321 = vmul.f32 %v313, %v317
        %v322 = vmul.f32 %v314, %v318
        %v323 = vand.u32 2147483647, %v321
        %v324 = vand.u32 2147483647, %v322
        %v325 = vrot.slane %v323, 4
        %v326 = vadd.f32 %v323, %v325
        %v327 = vrot.slane %v326, 2
        %v328 = vadd.f32 %v326, %v327
        %v329 = vrot.slane %v328, 1
        %v330 = vadd.f32 %v328, %v329
        %v331 = vrot.slane %v324, 4
        %v332 = vadd.f32 %v324, %v331
        %v333 = vrot.slane %v332, 2
        %v334 = vadd.f32 %v332, %v333
        %v335 = vrot.slane %v334, 1
        %v336 = vadd.f32 %v334, %v335
        %337 = vrot.lane.b32.xlu0 %v234, 127
        %v338 = vpop.permute.xlu0 %337
        %339 = vrot.lane.b32.xlu0 %v235, 127
        %v340 = vpop.permute.xlu0 %339
        %vm341 = vcmp.lt.s32.totalorder %v309, 127
        %v342 = vsel %vm341, %v338, %v340
        %v343 = vsel %vm341, %v340, %v338
        %v344 = vsub.f32 %v342, %v234
        %v345 = vsub.f32 %v343, %v235
        %v346 = vld [vmem:[#allocation9] sm:$0x3]
        %v348 = vperm.slane %v346, 0
        %v349 = vperm.slane %v346, 1
        %v352 = vmul.f32 %v344, %v348
        %v353 = vmul.f32 %v345, %v349
        %v354 = vand.u32 2147483647, %v352
        %v355 = vand.u32 2147483647, %v353
        %v356 = vrot.slane %v354, 4
        %v357 = vadd.f32 %v354, %v356
        %v358 = vrot.slane %v357, 2
        %v359 = vadd.f32 %v357, %v358
        %v360 = vrot.slane %v359, 1
        %v361 = vadd.f32 %v359, %v360
        %v362 = vrot.slane %v355, 4
        %v363 = vadd.f32 %v355, %v362
        %v364 = vrot.slane %v363, 2
        %v365 = vadd.f32 %v363, %v364
        %v366 = vrot.slane %v365, 1
        %v367 = vadd.f32 %v365, %v366
        %v368 = vld [vmem:[#allocation2] sm:$0x3]
        %v369 = vmul.f32 %v302, 6.975447e-05
        %v370 = vmul.f32 %v303, 6.975447e-05
        %v371 = vmul.f32 %v330, 6.510417e-05
        %v372 = vmul.f32 %v336, 6.510417e-05
        %v373 = vadd.f32 %v369, %v371
        %v374 = vadd.f32 %v370, %v372
        %v375 = vmul.f32 %v361, 6.510417e-05
        %v376 = vmul.f32 %v367, 6.510417e-05
        %v377 = vadd.f32 %v373, %v375
        %v378 = vadd.f32 %v374, %v376
        %v381 = vrot.slane %v378, 7
        %vm382 = vcmask 1040384
        %v383 = vsel %vm382, %v377, %v381
        %v385 = vadd.f32 %v368, %v383
        %386 = vst.msk [vmem:[#allocation2] sm:$0x3] %vm263, %v385
        // Predicated region
        $region49: #{tpu_custom_call.1} parent=31 // pred_check
          %p387 = pneg %p236
        $region50: #{tpu_custom_call.1} parent=31 // pred_check_branch
          %389 = sbr.rel (%p387) target = $region52
        $region51: #{tpu_custom_call.1} parent=31 // pred_region
          %v390 = vld [vmem:[#allocation2] sm:$0x3]
          %391 = vst.msk [vmem:[%s233] sm:$0x3] %vm263, %v390
        $region52: #{tpu_custom_call.1} parent=31 // pred_fallthru
          _
        %s392 = sand.u32 %s111, 1
        %s393 = scalar_lea.sflag [#allocation6], %s392
        %s394 = sand.u32 %s111, 1
        %s395 = smul.addr %s394, 2
        %s396 = scalar_lea.vmem [#allocation10], %s395
        // Predicated region
        $region53: #{tpu_custom_call.1} parent=31 // pred_check
          %p397 = pneg %p121
        $region54: #{tpu_custom_call.1} parent=31 // pred_check_branch
          %399 = sbr.rel (%p397) target = $region56
        $region55: #{tpu_custom_call.1} parent=31 // pred_region
          %401 = vsyncadd %s393, 0
          %s402 = smul.addr %s25, 2
          %s403 = scalar_lea.hbm %s3, %s402
          %s405 = sshll.u32 %s396, 4
          %s406 = int_to_ptr.vmem [resolvable:$true] %s405
          %s407 = sshll.u32 %s403, 4
          %s408 = int_to_ptr.hbm [resolvable:$true] %s407
          %410 = dma.vmem_to_hbm [thread:$0]  %s406, 32, %s408, %s393
        $region56: #{tpu_custom_call.1} parent=31 // pred_fallthru
          _
      $region32: #{tpu_custom_call.1} parent=5 // pred_fallthru
        _
      %p411 = scmp.le.s32.totalorder 2, %s16
      // Predicated region
      $region57: #{tpu_custom_call.1} parent=5 // pred_check
        %p412 = pneg %p411
      $region58: #{tpu_custom_call.1} parent=5 // pred_check_branch
        %414 = sbr.rel (%p412) target = $region60
      $region59: #{tpu_custom_call.1} parent=5 // pred_region
        %s415 = ssub.s32 %s16, 2
        // Predicated region
        $region61: #{tpu_custom_call.1} parent=59 // pred_check
          %p416 = pneg %p127
        $region62: #{tpu_custom_call.1} parent=59 // pred_check_branch
          %418 = sbr.rel (%p416) target = $region64
        $region63: #{tpu_custom_call.1} parent=59 // pred_region
          %s419 = sand.u32 %s112, 1
          %s420 = scalar_lea.sflag [#allocation6], %s419
          %s421 = sand.u32 %s112, 1
          %s422 = smul.addr %s421, 2
          %s423 = scalar_lea.vmem [#allocation10], %s422
          %425 = dma.done %s420, 32
        $region64: #{tpu_custom_call.1} parent=59 // pred_fallthru
          _
      $region60: #{tpu_custom_call.1} parent=5 // pred_fallthru
        _
    $region6: #{tpu_custom_call.1} parent=1 // loop_footer
      %s20 = sadd.s32 1, %s16
    $region7: #{tpu_custom_call.1} parent=1 // loop_footer_branch
      %15 = sbr.rel target = $region3
    $region8: #{tpu_custom_call.1} parent=1 // loop_exit
      _
    %426 = vsyncpa [#allocation5], 1
    %s427 = scalar_lea.sflag [#allocation5], 1
    %428 = vsyncpa %s427, 1
    %429 = vsyncpa [#allocation8], 1
    %430 = vsyncpa [#allocation6], 1
    %s431 = scalar_lea.sflag [#allocation6], 1
    %432 = vsyncpa %s431, 1

</llo_original>
